<compile_context>
chip_gen: v7x
topology: tpu7x:2x2x1
jax: 0.10.0
libtpu: 0.0.40
codegen_flags: <defaults>
</compile_context>

<pallas_src>
import functools

import jax
import jax.numpy as jnp
from jax import lax
from jax.experimental import pallas as pl
from jax.experimental.pallas import tpu as pltpu


def retrieval_kernel(x_ref, r_ref, wg_ref, wf_ref, b2_ref, gdiff_ref,
                     inv_tau_ref, out_ref, *, compute_dtype):
    """One batch tile.

    x_ref      : [TB, H]       input tile (native dtype; cast in-kernel)
    r_ref      : [TB*Kp, H]    flattened retrieval tile (native dtype)
    wg_ref     : [H, H]        dense_given weight, PyTorch [out, in] layout
    wf_ref     : [H, H]        dense_fused weight, PyTorch [out, in] layout
    b2_ref     : [2, H]        stacked biases (f32): row 0 = given, row 1 = fused
    gdiff_ref  : [TB, Kp]      gumbel noise difference g0 - g1 (f32)
    inv_tau_ref: [1]  (SMEM)   1 / tau
    out_ref    : [TB, Kp]      class-0 gumbel-softmax probability (f32)
    """
    tb, h = x_ref.shape
    kp = out_ref.shape[1]

    # In-kernel cast (no-op when compute_dtype == input dtype). Keeps the HBM
    # stream at the caller's precision and the MXU operands at compute_dtype.
    xv = x_ref[...].astype(compute_dtype)
    rv = r_ref[...].astype(compute_dtype)

    # y = x @ W.T + b : contract the 'in' dimension of both operands so the
    # PyTorch-layout [out, in] weight feeds the MXU directly (no transpose).
    dn = (((1,), (1,)), ((), ()))
    og = lax.dot_general(xv, wg_ref[...], dn,
                         preferred_element_type=jnp.float32) + b2_ref[0:1, :]   # [TB, H]
    of = lax.dot_general(rv, wf_ref[...], dn,
                         preferred_element_type=jnp.float32) + b2_ref[1:2, :]   # [TB*Kp, H]

    # Fused L2 normalization: scale the tiny [TB, Kp] similarity by rsqrt of
    # the squared norms (rsqrt -> EUP slot). eps keeps padded rows finite.
    og_inv = lax.rsqrt(jnp.sum(og * og, axis=-1, keepdims=True) + 1e-12)        # [TB, 1]
    # Layout no-op: Kp is a multiple of 8 (enforced by the wrapper), so the
    # reshape never crosses the (8, 128) sublane tiling.
    of3 = of.reshape(tb, kp, h)                                                  # [TB, Kp, H]
    of_inv = lax.rsqrt(jnp.sum(of3 * of3, axis=-1) + 1e-12)                      # [TB, Kp]

    # Per-row dot over H on the VPU (broadcast multiply) + XLU lane reduce.
    # Deliberately NOT an MXU matmul: M=1 batched matmuls would waste the MXU
    # and serialize result pops; the flop count here is tiny (2*TB*Kp*H).
    sim_raw = jnp.sum(og[:, None, :] * of3, axis=-1)                             # [TB, Kp]

    sim = sim_raw * og_inv * of_inv          # cosine similarity
    sim = (sim + 1.0) * 0.5                  # mapped to [0, 1]
    sim = jnp.clip(sim, 0.0, 1.0)            # fp/bf16 error can leave [0, 1] -> NaN in log

    # 2-class soft gumbel-softmax collapsed to a single sigmoid, single log:
    #   softmax([(l0+g0)/tau, (l1+g1)/tau])[0] = sigmoid((l0 - l1 + g0 - g1)/tau)
    #   l0 - l1 = log((sim + eps) / (1 - sim + eps))
    d = (jnp.log((sim + 1e-20) / ((1.0 - sim) + 1e-20)) + gdiff_ref[...]) \
        * inv_tau_ref[0]
    out_ref[...] = (1.0 / (1.0 + jnp.exp(-d))).astype(out_ref.dtype)


def _batch_tile(batch, kp, target_rows=1024):
    """Batch rows per grid step.

    Targets ~target_rows of the flattened (B*Kp, H) activation per tile --
    large enough to amortize the ~0.35us/step grid overhead and give the MXU
    long uninterrupted runs (raise toward 2048 on 128-MiB-VMEM v5e/v6e if the
    grid would otherwise be only 1-2 steps; keep tighter on v7x's 64 MiB).
    TB is rounded to MXU/layout friendly multiples: TB*Kp a multiple of 256
    where possible (256x256 MXU tile), TB a multiple of 16 (bf16 sublane
    packing), minimum 8 (f32 sublane tile) unless the whole batch fits.
    """
    if batch * kp <= target_rows:
        return batch
    tb = max(8, target_rows // kp)
    if tb >= batch:
        return batch
    for m in (32, 16, 8):
        if tb >= m:
            return (tb // m) * m
    return tb


def retrieval_classifier(x, r, wg, bg, wf, bf, gumbel_noise, tau=1.0,
                         compute_dtype=jnp.float32, batch_tile=None):
    """RetrievalClassifier forward pass.

    x: [B, H], r: [B, K, H], wg/wf: [H, H] PyTorch [out, in] layout (NOT
    pre-transposed), bg/bf: [H], gumbel_noise: [B, K, 2] ~ Gumbel(0, 1).

    compute_dtype: dtype of the MXU matmul operands. bf16 is recommended on
    ALL generations (v5e/v6e/v7x) -- the MXU is natively bf16 everywhere and
    it halves weight VMEM; activations are cast inside the kernel so the HBM
    stream stays at the caller's precision (pass bf16 x/r for the minimal
    2 B/elem stream). The normalization / log / sigmoid epilogue is always
    f32, so the missing bf16 VPU/EUP on v5e is irrelevant. Callers relying on
    probabilities extremely close to 0/1 should keep the f32 path.

    Returns [B, K] class-0 probabilities (f32).
    """
    B, H = x.shape
    _, K, _ = r.shape

    # Pad K to a multiple of 8 so the in-kernel [TB*Kp, H] -> [TB, Kp, H]
    # reshape is a pure layout no-op (no per-step VMEM relayout copy). The
    # padded columns compute on zero rows (finite thanks to clamp/eps) and are
    # sliced off below. When K % 8 == 0 (common case) this costs nothing.
    Kp = ((K + 7) // 8) * 8
    if Kp != K:
        r = jnp.pad(r, ((0, 0), (0, Kp - K), (0, 0)))
        gumbel_noise = jnp.pad(gumbel_noise, ((0, 0), (0, Kp - K), (0, 0)))

    TB = batch_tile if batch_tile is not None else _batch_tile(B, Kp)
    grid = (pl.cdiv(B, TB),)

    r_flat = r.reshape(B * Kp, H)                                     # one 2-D matmul, M = B*Kp
    b2 = jnp.stack([bg, bf], axis=0).astype(jnp.float32)              # [2, H] single operand
    gdiff = (gumbel_noise[..., 0] - gumbel_noise[..., 1]).astype(jnp.float32)   # [B, Kp]
    inv_tau = jnp.full((1,), 1.0 / tau, dtype=jnp.float32)

    # Weights: one tiny one-time cast pass; activations are NOT cast here
    # (streamed native and cast in-kernel -- avoids an extra HBM pass over r).
    wg_c = wg.astype(compute_dtype)
    wf_c = wf.astype(compute_dtype)

    # Explicit VMEM budget with headroom (resident weights still get two
    # buffers; r/x tiles are double-buffered at their native dtype; `of` is a
    # f32 intermediate). Capped at 64 MiB so it is valid on v7x too.
    # For very large H, single-buffer the weights (pipeline_mode=pl.Buffered(1)
    # on wg/wf/b2) or tile the H contraction with an inner "arbitrary" axis.
    w_item = jnp.dtype(compute_dtype).itemsize
    est = (2 * H * H * w_item * 2              # wg, wf (x2 buffers)
           + 2 * H * 4 * 2                     # biases
           + TB * H * x.dtype.itemsize * 2     # x tile (x2 buffers)
           + TB * Kp * H * r.dtype.itemsize * 2  # r tile (x2 buffers)
           + TB * Kp * H * 4                   # of (f32 intermediate)
           + TB * H * 4                        # og (f32 intermediate)
           + TB * Kp * 4 * 6)                  # gdiff/out/sim/etc
    vmem_limit = int(min(max(2 * est, 32 * 1024 * 1024), 64 * 1024 * 1024))

    kernel = functools.partial(retrieval_kernel, compute_dtype=compute_dtype)

    in_specs = [
        pl.BlockSpec((TB, H), lambda i: (i, 0)),               # x tile (pipelined)
        pl.BlockSpec((TB * Kp, H), lambda i: (i, 0)),          # retrieval tile (pipelined)
        pl.BlockSpec((H, H), lambda i: (0, 0)),                # wg: resident, DMA'd once
        pl.BlockSpec((H, H), lambda i: (0, 0)),                # wf: resident, DMA'd once
        pl.BlockSpec((2, H), lambda i: (0, 0)),                # biases: resident
        pl.BlockSpec((TB, Kp), lambda i: (i, 0)),              # gumbel diff tile
        pl.BlockSpec(memory_space=pltpu.MemorySpace.SMEM),     # 1/tau scalar
    ]
    out_specs = pl.BlockSpec((TB, Kp), lambda i: (i, 0))

    out = pl.pallas_call(
        kernel,
        out_shape=jax.ShapeDtypeStruct((B, Kp), jnp.float32),
        grid=grid,
        in_specs=in_specs,
        out_specs=out_specs,
        compiler_params=pltpu.CompilerParams(
            dimension_semantics=("parallel",),   # multi-step grids shard across v7x's 2 TCs
            vmem_limit_bytes=vmem_limit),
    )(
        x,
        r_flat,
        wg_c,
        wf_c,
        b2,
        gdiff,
        inv_tau,
    )
    return out if Kp == K else out[:, :K]


def reference_jax(x, r, wg, bg, wf, bf, gumbel_noise, tau=1.0):
    og = x @ wg.T + bg
    og = og / jnp.linalg.norm(og, axis=-1, keepdims=True)
    of = r @ wf.T + bf
    of = of / jnp.linalg.norm(of, axis=-1, keepdims=True)
    sim = jnp.einsum('bh,bkh->bk', og, of)
    sim = (sim + 1.0) / 2.0
    prob = jnp.stack([sim, 1.0 - sim], axis=-1)
    logit = jnp.log(prob + 1e-20)
    z = (logit + gumbel_noise) / tau
    y = jax.nn.softmax(z, axis=-1)
    return y[:, :, 0]


if __name__ == "__main__":
    B, K, H = 2, 8, 32  # batch, num retrieval candidates, hidden_size

    key = jax.random.PRNGKey(0)
    kx, kr, kwg, kbg, kwf, kbf, kg = jax.random.split(key, 7)

    x = jax.random.normal(kx, (B, H), dtype=jnp.float32)
    r = jax.random.normal(kr, (B, K, H), dtype=jnp.float32)

    bound = 1.0 / (H ** 0.5)  # nn.Linear default init range
    wg = jax.random.uniform(kwg, (H, H), minval=-bound, maxval=bound, dtype=jnp.float32)
    bg = jax.random.uniform(kbg, (H,),   minval=-bound, maxval=bound, dtype=jnp.float32)
    wf = jax.random.uniform(kwf, (H, H), minval=-bound, maxval=bound, dtype=jnp.float32)
    bf = jax.random.uniform(kbf, (H,),   minval=-bound, maxval=bound, dtype=jnp.float32)

    gumbel_noise = jax.random.gumbel(kg, (B, K, 2), dtype=jnp.float32)

    ref = reference_jax(x, r, wg, bg, wf, bf, gumbel_noise, tau=1.0)

    # f32 path (tight check).
    out = retrieval_classifier(x, r, wg, bg, wf, bf, gumbel_noise, tau=1.0)
    out = jax.block_until_ready(out)
    assert out.shape == (B, K)
    assert jnp.allclose(out, ref, atol=1e-4, rtol=1e-4), (out, ref)

    # bf16 MXU-operand path (recommended on v5e/v6e/v7x); epilogue stays f32.
    out_bf16 = retrieval_classifier(x, r, wg, bg, wf, bf, gumbel_noise, tau=1.0,
                                    compute_dtype=jnp.bfloat16)
    out_bf16 = jax.block_until_ready(out_bf16)
    assert jnp.allclose(out_bf16, ref, atol=5e-2, rtol=5e-2), (out_bf16, ref)

    print("KERNEL_OK")
</pallas_src>

<mosaic_0001>
module attributes {stable_mosaic.version = 11 : i64} {
  func.func @retrieval_kernel(%arg0: i32, %arg1: memref<2x32xf32, #tpu.memory_space<vmem>>, %arg2: memref<16x32xf32, #tpu.memory_space<vmem>>, %arg3: memref<32x32xf32, #tpu.memory_space<vmem>>, %arg4: memref<32x32xf32, #tpu.memory_space<vmem>>, %arg5: memref<2x32xf32, #tpu.memory_space<vmem>>, %arg6: memref<2x8xf32, #tpu.memory_space<vmem>>, %arg7: memref<1xf32, #tpu.memory_space<smem>>, %arg8: memref<2x8xf32, #tpu.memory_space<vmem>>) attributes {dimension_semantics = [#tpu.dimension_semantics<parallel>], iteration_bounds = array<i64: 1>, scalar_prefetch = 0 : i64, scratch_operands = 0 : i64, tpu.core_type = #tpu.core_type<tc>, window_params = [{transform_indices = @transform_0, window_bounds = array<i64: 2, 32>}, {transform_indices = @transform_1, window_bounds = array<i64: 16, 32>}, {pipeline_mode = #tpu.pipeline_mode<synchronous>, transform_indices = @transform_2, window_bounds = array<i64: 32, 32>}, {pipeline_mode = #tpu.pipeline_mode<synchronous>, transform_indices = @transform_3, window_bounds = array<i64: 32, 32>}, {pipeline_mode = #tpu.pipeline_mode<synchronous>, transform_indices = @transform_4, window_bounds = array<i64: 2, 32>}, {transform_indices = @transform_5, window_bounds = array<i64: 2, 8>}, {transform_indices = @transform_6, window_bounds = array<i64: 1>}, {transform_indices = @transform_7, window_bounds = array<i64: 2, 8>}]} {
    %c0 = arith.constant 0 : index
    %c0_0 = arith.constant 0 : index
    %0 = vector.load %arg1[%c0, %c0_0] : memref<2x32xf32, #tpu.memory_space<vmem>>, vector<2x32xf32>
    %c0_1 = arith.constant 0 : index
    %c0_2 = arith.constant 0 : index
    %1 = vector.load %arg2[%c0_1, %c0_2] : memref<16x32xf32, #tpu.memory_space<vmem>>, vector<16x32xf32>
    %c0_3 = arith.constant 0 : index
    %c0_4 = arith.constant 0 : index
    %2 = vector.load %arg3[%c0_3, %c0_4] : memref<32x32xf32, #tpu.memory_space<vmem>>, vector<32x32xf32>
    %cst = arith.constant dense<0.000000e+00> : vector<2x32xf32>
    %3 = tpu.matmul %0, %2, %cst {dimension_numbers = #tpu.dot_dimension_numbers<[1], [1], [0], [0], [0, 0, 1, 0], [], []>} : vector<2x32xf32>, vector<32x32xf32>, vector<2x32xf32> -> vector<2x32xf32>
    %c0_5 = arith.constant 0 : index
    %c0_6 = arith.constant 0 : index
    %4 = vector.load %arg5[%c0_5, %c0_6] : memref<2x32xf32, #tpu.memory_space<vmem>>, vector<1x32xf32>
    %5 = vector.broadcast %4 : vector<1x32xf32> to vector<2x32xf32>
    %6 = arith.addf %3, %5 : vector<2x32xf32>
    %c0_7 = arith.constant 0 : index
    %c0_8 = arith.constant 0 : index
    %7 = vector.load %arg4[%c0_7, %c0_8] : memref<32x32xf32, #tpu.memory_space<vmem>>, vector<32x32xf32>
    %cst_9 = arith.constant dense<0.000000e+00> : vector<16x32xf32>
    %8 = tpu.matmul %1, %7, %cst_9 {dimension_numbers = #tpu.dot_dimension_numbers<[1], [1], [0], [0], [0, 0, 1, 0], [], []>} : vector<16x32xf32>, vector<32x32xf32>, vector<16x32xf32> -> vector<16x32xf32>
    %c1 = arith.constant 1 : index
    %c0_10 = arith.constant 0 : index
    %9 = vector.load %arg5[%c1, %c0_10] : memref<2x32xf32, #tpu.memory_space<vmem>>, vector<1x32xf32>
    %10 = vector.broadcast %9 : vector<1x32xf32> to vector<16x32xf32>
    %11 = arith.addf %8, %10 : vector<16x32xf32>
    %12 = arith.mulf %6, %6 : vector<2x32xf32>
    %cst_11 = arith.constant dense<0.000000e+00> : vector<2xf32>
    %13 = vector.multi_reduction <add>, %12, %cst_11 [1] : vector<2x32xf32> to vector<2xf32>
    %14 = vector.shape_cast %13 : vector<2xf32> to vector<2x1xf32>
    %cst_12 = arith.constant 9.99999996E-13 : f32
    %15 = vector.broadcast %cst_12 : f32 to vector<2x1xf32>
    %16 = arith.addf %14, %15 : vector<2x1xf32>
    %17 = math.rsqrt %16 : vector<2x1xf32>
    %18 = vector.shape_cast %11 : vector<16x32xf32> to vector<2x8x32xf32>
    %19 = arith.mulf %18, %18 : vector<2x8x32xf32>
    %cst_13 = arith.constant dense<0.000000e+00> : vector<2x8xf32>
    %20 = vector.multi_reduction <add>, %19, %cst_13 [2] : vector<2x8x32xf32> to vector<2x8xf32>
    %cst_14 = arith.constant 9.99999996E-13 : f32
    %21 = vector.broadcast %cst_14 : f32 to vector<2x8xf32>
    %22 = arith.addf %20, %21 : vector<2x8xf32>
    %23 = math.rsqrt %22 : vector<2x8xf32>
    %24 = vector.shape_cast %6 : vector<2x32xf32> to vector<2x1x32xf32>
    %25 = vector.broadcast %24 : vector<2x1x32xf32> to vector<2x8x32xf32>
    %26 = arith.mulf %25, %18 : vector<2x8x32xf32>
    %cst_15 = arith.constant dense<0.000000e+00> : vector<2x8xf32>
    %27 = vector.multi_reduction <add>, %26, %cst_15 [2] : vector<2x8x32xf32> to vector<2x8xf32>
    %28 = vector.broadcast %17 : vector<2x1xf32> to vector<2x8xf32>
    %29 = arith.mulf %27, %28 : vector<2x8xf32>
    %30 = arith.mulf %29, %23 : vector<2x8xf32>
    %cst_16 = arith.constant 1.000000e+00 : f32
    %31 = vector.broadcast %cst_16 : f32 to vector<2x8xf32>
    %32 = arith.addf %30, %31 : vector<2x8xf32>
    %cst_17 = arith.constant 5.000000e-01 : f32
    %33 = vector.broadcast %cst_17 : f32 to vector<2x8xf32>
    %34 = arith.mulf %32, %33 : vector<2x8xf32>
    %cst_18 = arith.constant 0.000000e+00 : f32
    %cst_19 = arith.constant 1.000000e+00 : f32
    %35 = vector.broadcast %cst_18 : f32 to vector<2x8xf32>
    %36 = arith.maximumf %35, %34 : vector<2x8xf32>
    %37 = vector.broadcast %cst_19 : f32 to vector<2x8xf32>
    %38 = arith.minimumf %37, %36 : vector<2x8xf32>
    %cst_20 = arith.constant 9.99999968E-21 : f32
    %39 = vector.broadcast %cst_20 : f32 to vector<2x8xf32>
    %40 = arith.addf %38, %39 : vector<2x8xf32>
    %cst_21 = arith.constant 1.000000e+00 : f32
    %41 = vector.broadcast %cst_21 : f32 to vector<2x8xf32>
    %42 = arith.subf %41, %38 : vector<2x8xf32>
    %cst_22 = arith.constant 9.99999968E-21 : f32
    %43 = vector.broadcast %cst_22 : f32 to vector<2x8xf32>
    %44 = arith.addf %42, %43 : vector<2x8xf32>
    %45 = arith.divf %40, %44 : vector<2x8xf32>
    %46 = math.log %45 : vector<2x8xf32>
    %c0_23 = arith.constant 0 : index
    %c0_24 = arith.constant 0 : index
    %47 = vector.load %arg6[%c0_23, %c0_24] : memref<2x8xf32, #tpu.memory_space<vmem>>, vector<2x8xf32>
    %48 = arith.addf %46, %47 : vector<2x8xf32>
    %c0_25 = arith.constant 0 : index
    %49 = memref.load %arg7[%c0_25] : memref<1xf32, #tpu.memory_space<smem>>
    %50 = vector.broadcast %49 : f32 to vector<2x8xf32>
    %51 = arith.mulf %48, %50 : vector<2x8xf32>
    %cst_26 = arith.constant 0.000000e+00 : f32
    %52 = vector.broadcast %cst_26 : f32 to vector<2x8xf32>
    %53 = arith.subf %52, %51 : vector<2x8xf32>
    %54 = math.exp %53 : vector<2x8xf32>
    %cst_27 = arith.constant 1.000000e+00 : f32
    %55 = vector.broadcast %cst_27 : f32 to vector<2x8xf32>
    %56 = arith.addf %55, %54 : vector<2x8xf32>
    %cst_28 = arith.constant 1.000000e+00 : f32
    %57 = vector.broadcast %cst_28 : f32 to vector<2x8xf32>
    %58 = arith.divf %57, %56 : vector<2x8xf32>
    %c0_29 = arith.constant 0 : index
    %c0_30 = arith.constant 0 : index
    %59 = vector.load %arg8[%c0_29, %c0_30] : memref<2x8xf32, #tpu.memory_space<vmem>>, vector<2x8xf32>
    tpu.vector_store %arg8[%c0_29, %c0_30], %58 {strides = array<i32>} : memref<2x8xf32, #tpu.memory_space<vmem>>, vector<2x8xf32>,
    return
  }
  func.func @transform_0(%arg0: i32) -> (i32, i32) {
    %c0_i32 = arith.constant 0 : i32
    %c0_i32_0 = arith.constant 0 : i32
    return %arg0, %c0_i32 : i32, i32
  }
  func.func @transform_1(%arg0: i32) -> (i32, i32) {
    %c0_i32 = arith.constant 0 : i32
    %c0_i32_0 = arith.constant 0 : i32
    return %arg0, %c0_i32 : i32, i32
  }
  func.func @transform_2(%arg0: i32) -> (i32, i32) {
    %c0_i32 = arith.constant 0 : i32
    %c0_i32_0 = arith.constant 0 : i32
    %c0_i32_1 = arith.constant 0 : i32
    return %c0_i32, %c0_i32_0 : i32, i32
  }
  func.func @transform_3(%arg0: i32) -> (i32, i32) {
    %c0_i32 = arith.constant 0 : i32
    %c0_i32_0 = arith.constant 0 : i32
    %c0_i32_1 = arith.constant 0 : i32
    return %c0_i32, %c0_i32_0 : i32, i32
  }
  func.func @transform_4(%arg0: i32) -> (i32, i32) {
    %c0_i32 = arith.constant 0 : i32
    %c0_i32_0 = arith.constant 0 : i32
    %c0_i32_1 = arith.constant 0 : i32
    return %c0_i32, %c0_i32_0 : i32, i32
  }
  func.func @transform_5(%arg0: i32) -> (i32, i32) {
    %c0_i32 = arith.constant 0 : i32
    %c0_i32_0 = arith.constant 0 : i32
    return %arg0, %c0_i32 : i32, i32
  }
  func.func @transform_6(%arg0: i32) -> i32 {
    %c0_i32 = arith.constant 0 : i32
    %c0_i32_0 = arith.constant 0 : i32
    return %c0_i32 : i32
  }
  func.func @transform_7(%arg0: i32) -> (i32, i32) {
    %c0_i32 = arith.constant 0 : i32
    %c0_i32_0 = arith.constant 0 : i32
    return %arg0, %c0_i32 : i32, i32
  }
}

</mosaic_0001>

<llo_original>
// kernel: tpu_custom_call.1
$region0: #{tpu_custom_call.1}
  #allocation0 [shape = 'u32[]', space=smem, size = 0x4, offset = 0x4, fixed_abs, tag = 'smem constant byte address 0x4 - core index']
  #allocation1 [shape = 'u32[144,128]{1,0:T(1,128)}', space=vmem, size = 0x12000, scoped, tag = 'internal scratch']
  #allocation2 [shape = 'f32[1]{0:T(128)S(6)}', space=smem, size = 0x200, scoped, tag = 'scoped memory for tpu_custom_call.1']
  %s0 = inlined_call_operand.vmem [shape: f32[2,32], index: 0, kind: input, shape index: {}]
  %s1 = inlined_call_operand.hbm [shape: f32[16,32], index: 1, kind: input, shape index: {}]
  %s2 = inlined_call_operand.hbm [shape: f32[32,32], index: 2, kind: input, shape index: {}]
  %s3 = inlined_call_operand.hbm [shape: f32[32,32], index: 3, kind: input, shape index: {}]
  %s4 = inlined_call_operand.vmem [shape: f32[2,32], index: 4, kind: input, shape index: {}]
  %s5 = inlined_call_operand.vmem [shape: f32[2,8], index: 5, kind: input, shape index: {}]
  %s6 = inlined_call_operand.<no memory space> [shape: f32[1], index: 6, kind: input, shape index: {}]
  %s7 = inlined_call_operand.hbm [shape: f32[2,8], index: 7, kind: output, shape index: {}]
  %s8 = sld [smem:[#allocation0]]
  $region50: #{tpu_custom_call.1} parent=0
    _
  %s10 = ssub.s32 1, %s8
  %s11 = scalar_select 0, %s10, %s8
  %12 = sst [smem:[#allocation2]] %s6
  $region1: #{tpu_custom_call.1} parent=0
    #allocation3 [shape = 'u8[8192]{0}', space=vmem, size = 0x2000, scoped, tag = 'input window, operand 1, single buffered']
    #allocation4 [shape = 's32[1]{0}', space=sflag, size = 0x4, scoped, tag = 'scoped memory for tpu_custom_call.1']
    #allocation5 [shape = 's32[1]{0}', space=sflag, size = 0x4, scoped, tag = 'scoped memory for tpu_custom_call.1']
    #allocation6 [shape = 'u8[16384]{0}', space=vmem, size = 0x4000, scoped, tag = 'input window, operand 2, single buffered']
    #allocation7 [shape = 's32[1]{0}', space=sflag, size = 0x4, scoped, tag = 'scoped memory for tpu_custom_call.1']
    #allocation8 [shape = 'u8[16384]{0}', space=vmem, size = 0x4000, scoped, tag = 'input window, operand 3, single buffered']
    #allocation9 [shape = 'u8[1024]{0}', space=vmem, size = 0x400, scoped, tag = 'output window, operand 0, single buffered']
    %13 = vsyncpa [#allocation4], 0
    %14 = vsyncpa [#allocation7], 0
    %15 = vsyncpa [#allocation5], 0
    // Predicated region
    $region2: #{tpu_custom_call.1} parent=1 // pred_check
      _
    $region3: #{tpu_custom_call.1} parent=1 // pred_check_branch
      %17 = sbr.rel (0) target = $region5
    $region4: #{tpu_custom_call.1} parent=1 // pred_region
      _
    $region5: #{tpu_custom_call.1} parent=1 // pred_fallthru
      _
    // Predicated region
    $region6: #{tpu_custom_call.1} parent=1 // pred_check
      _
    $region7: #{tpu_custom_call.1} parent=1 // pred_check_branch
      %19 = sbr.rel (0) target = $region9
    $region8: #{tpu_custom_call.1} parent=1 // pred_region
      %s21 = ssub.s32 256, 256
      %22 = vsyncadd [#allocation4], %s21
      %s23 = sshll.u32 [#allocation3], 4
      %s24 = int_to_ptr.vmem [resolvable:$true] %s23
      %29 = dma.hbm_to_vmem [thread:$0]  %s1, 256, %s24, [#allocation4], 128, 128, 8
    $region9: #{tpu_custom_call.1} parent=1 // pred_fallthru
      _
    // Predicated region
    $region10: #{tpu_custom_call.1} parent=1 // pred_check
      _
    $region11: #{tpu_custom_call.1} parent=1 // pred_check_branch
      %31 = sbr.rel (0) target = $region13
    $region12: #{tpu_custom_call.1} parent=1 // pred_region
      %s33 = ssub.s32 512, 512
      %34 = vsyncadd [#allocation7], %s33
      %s35 = sshll.u32 [#allocation6], 4
      %s36 = int_to_ptr.vmem [resolvable:$true] %s35
      %41 = dma.hbm_to_vmem [thread:$0]  %s2, 512, %s36, [#allocation7], 128, 128, 8
    $region13: #{tpu_custom_call.1} parent=1 // pred_fallthru
      _
    // Predicated region
    $region14: #{tpu_custom_call.1} parent=1 // pred_check
      _
    $region15: #{tpu_custom_call.1} parent=1 // pred_check_branch
      %43 = sbr.rel (0) target = $region17
    $region16: #{tpu_custom_call.1} parent=1 // pred_region
      %s45 = ssub.s32 512, 512
      %46 = vsyncadd [#allocation7], %s45
      %s47 = sshll.u32 [#allocation8], 4
      %s48 = int_to_ptr.vmem [resolvable:$true] %s47
      %53 = dma.hbm_to_vmem [thread:$0]  %s3, 512, %s48, [#allocation7], 128, 128, 8
    $region17: #{tpu_custom_call.1} parent=1 // pred_fallthru
      _
    // Predicated region
    $region18: #{tpu_custom_call.1} parent=1 // pred_check
      _
    $region19: #{tpu_custom_call.1} parent=1 // pred_check_branch
      %55 = sbr.rel (0) target = $region21
    $region20: #{tpu_custom_call.1} parent=1 // pred_region
      _
    $region21: #{tpu_custom_call.1} parent=1 // pred_fallthru
      _
    // Predicated region
    $region22: #{tpu_custom_call.1} parent=1 // pred_check
      _
    $region23: #{tpu_custom_call.1} parent=1 // pred_check_branch
      %57 = sbr.rel (0) target = $region25
    $region24: #{tpu_custom_call.1} parent=1 // pred_region
      _
    $region25: #{tpu_custom_call.1} parent=1 // pred_fallthru
      _
    // Predicated region
    $region26: #{tpu_custom_call.1} parent=1 // pred_check
      _
    $region27: #{tpu_custom_call.1} parent=1 // pred_check_branch
      %59 = sbr.rel (0) target = $region29
    $region28: #{tpu_custom_call.1} parent=1 // pred_region
      _
    $region29: #{tpu_custom_call.1} parent=1 // pred_fallthru
      _
    // Predicated region
    $region30: #{tpu_custom_call.1} parent=1 // pred_check
      _
    $region31: #{tpu_custom_call.1} parent=1 // pred_check_branch
      %61 = sbr.rel (0) target = $region33
    $region32: #{tpu_custom_call.1} parent=1 // pred_region
      %62 = dma.done [#allocation4], 256
    $region33: #{tpu_custom_call.1} parent=1 // pred_fallthru
      _
    // Predicated region
    $region34: #{tpu_custom_call.1} parent=1 // pred_check
      _
    $region35: #{tpu_custom_call.1} parent=1 // pred_check_branch
      %64 = sbr.rel (0) target = $region37
    $region36: #{tpu_custom_call.1} parent=1 // pred_region
      %65 = dma.done [#allocation7], 512
    $region37: #{tpu_custom_call.1} parent=1 // pred_fallthru
      _
    // Predicated region
    $region38: #{tpu_custom_call.1} parent=1 // pred_check
      _
    $region39: #{tpu_custom_call.1} parent=1 // pred_check_branch
      %67 = sbr.rel (0) target = $region41
    $region40: #{tpu_custom_call.1} parent=1 // pred_region
      %68 = dma.done [#allocation7], 512
    $region41: #{tpu_custom_call.1} parent=1 // pred_fallthru
      _
    %v69 = vld [vmem:[%s0] sm:$0x3]
    %v70 = vld [vmem:[#allocation3] sm:$0xff]
    %v71 = vld [vmem:[#allocation3 + $0x8] sm:$0xff]
    %v72 = vld [vmem:[#allocation6] sm:$0xff]
    %v73 = vld [vmem:[#allocation6 + $0x8] sm:$0xff]
    %v74 = vld [vmem:[#allocation6 + $0x10] sm:$0xff]
    %v75 = vld [vmem:[#allocation6 + $0x18] sm:$0xff]
    %v76 = vld [vmem:[%s4] sm:$0x1]
    %v77 = vlaneseq
    %v78 = vshrl.u32 %v77, 7
    %v79 = vsub.s32 0, %v78
    %v80 = vrot.slane %v76, %v79
    %vm81 = vcmask 261120
    %v83 = vsel %vm81, %v69, 0
    %v86 = vsel %vm81, %v72, 0
    %v89 = vsel %vm81, %v73, 0
    %v92 = vsel %vm81, %v74, 0
    %v95 = vsel %vm81, %v75, 0
    %97 = vmatprep.subr.mxu0 0.0
    %98 = vmatpush1.xpose.msra.mxu0 %v86
    %99 = vmatprep.subr.mxu0 0.0
    %100 = vmatpush1.xpose.msra.mxu0 %v89
    %101 = vmatprep.subr.mxu0 0.0
    %102 = vmatpush1.xpose.msra.mxu0 %v92
    %103 = vmatprep.subr.mxu0 0.0
    %104 = vmatpush1.xpose.msra.mxu0 %v95
    %105 = vmatprep.subr.mxu0 0.0
    %106 = vmatpush1.xpose.msra.mxu0 0.0
    %107 = vmatprep.subr.mxu0 0.0
    %108 = vmatpush1.xpose.msra.mxu0 0.0
    %109 = vmatprep.subr.mxu0 0.0
    %110 = vmatpush1.xpose.msra.mxu0 0.0
    %111 = vmatprep.subr.mxu0 0.0
    %112 = vmatpush1.xpose.msra.mxu0 0.0
    %113 = vmatprep.subr.mxu0 0.0
    %114 = vmatpush1.xpose.msra.mxu0 0.0
    %115 = vmatprep.subr.mxu0 0.0
    %116 = vmatpush1.xpose.msra.mxu0 0.0
    %117 = vmatprep.subr.mxu0 0.0
    %118 = vmatpush1.xpose.msra.mxu0 0.0
    %119 = vmatprep.subr.mxu0 0.0
    %120 = vmatpush1.xpose.msra.mxu0 0.0
    %121 = vmatprep.subr.mxu0 0.0
    %122 = vmatpush1.xpose.msra.mxu0 0.0
    %123 = vmatprep.subr.mxu0 0.0
    %124 = vmatpush1.xpose.msra.mxu0 0.0
    %125 = vmatprep.subr.mxu0 0.0
    %126 = vmatpush1.xpose.msra.mxu0 0.0
    %127 = vmatprep.subr.mxu0 0.0
    %128 = vmatpush1.xpose.msra.mxu0 0.0
    %129 = vmatprep.subr.mxu0 0.0
    %130 = vmatpush1.xpose.msra.mxu0 0.0
    %131 = vmatprep.subr.mxu0 0.0
    %132 = vmatpush1.xpose.msra.mxu0 0.0
    %133 = vmatprep.subr.mxu0 0.0
    %134 = vmatpush1.xpose.msra.mxu0 0.0
    %135 = vmatprep.subr.mxu0 0.0
    %136 = vmatpush1.xpose.msra.mxu0 0.0
    %137 = vmatprep.subr.mxu0 0.0
    %138 = vmatpush1.xpose.msra.mxu0 0.0
    %139 = vmatprep.subr.mxu0 0.0
    %140 = vmatpush1.xpose.msra.mxu0 0.0
    %141 = vmatprep.subr.mxu0 0.0
    %142 = vmatpush1.xpose.msra.mxu0 0.0
    %143 = vmatprep.subr.mxu0 0.0
    %144 = vmatpush1.xpose.msra.mxu0 0.0
    %145 = vmatprep.subr.mxu0 0.0
    %146 = vmatpush1.xpose.msra.mxu0 0.0
    %147 = vmatprep.subr.mxu0 0.0
    %148 = vmatpush1.xpose.msra.mxu0 0.0
    %149 = vmatprep.subr.mxu0 0.0
    %150 = vmatpush1.xpose.msra.mxu0 0.0
    %151 = vmatprep.subr.mxu0 0.0
    %152 = vmatpush1.xpose.msra.mxu0 0.0
    %153 = vmatprep.subr.mxu0 0.0
    %154 = vmatpush1.xpose.msra.mxu0 0.0
    %155 = vmatprep.subr.mxu0 0.0
    %156 = vmatpush1.xpose.msra.mxu0 0.0
    %157 = vmatprep.subr.mxu0 0.0
    %158 = vmatpush1.xpose.msra.mxu0 0.0
    %159 = vmatprep.subr.mxu0 0.0
    %160 = vmatpush1.xpose.msra.mxu0 0.0
    %161 = vmatprep.mubr.f32.mxu0 0.0
    %162 = vmatmul.mubr.f32.gmra.mrb[0].mxu0 %v83
    %v163 = vpop.f32.mrb[0].mxu0
    %v164 = vadd.f32 %v80, %v163
    %v165 = vpop.f32.mrb[0].mxu0
    %166 = vdwg.mxu0
    %v167 = vld [vmem:[#allocation8] sm:$0xff]
    %v168 = vld [vmem:[#allocation8 + $0x8] sm:$0xff]
    %v169 = vld [vmem:[#allocation8 + $0x10] sm:$0xff]
    %v170 = vld [vmem:[#allocation8 + $0x18] sm:$0xff]
    %v171 = vld [vmem:[%s4 + $0x1] sm:$0x1]
    %v172 = vlaneseq
    %v173 = vshrl.u32 %v172, 7
    %v174 = vsub.s32 0, %v173
    %v175 = vrot.slane %v171, %v174
    %v177 = vsel %vm81, %v70, 0
    %v180 = vsel %vm81, %v71, 0
    %v183 = vsel %vm81, %v167, 0
    %v186 = vsel %vm81, %v168, 0
    %v189 = vsel %vm81, %v169, 0
    %v192 = vsel %vm81, %v170, 0
    %194 = vmatprep.subr.mxu0 0.0
    %195 = vmatpush1.xpose.msra.mxu0 %v183
    %196 = vmatprep.subr.mxu0 0.0
    %197 = vmatpush1.xpose.msra.mxu0 %v186
    %198 = vmatprep.subr.mxu0 0.0
    %199 = vmatpush1.xpose.msra.mxu0 %v189
    %200 = vmatprep.subr.mxu0 0.0
    %201 = vmatpush1.xpose.msra.mxu0 %v192
    %202 = vmatprep.subr.mxu0 0.0
    %203 = vmatpush1.xpose.msra.mxu0 0.0
    %204 = vmatprep.subr.mxu0 0.0
    %205 = vmatpush1.xpose.msra.mxu0 0.0
    %206 = vmatprep.subr.mxu0 0.0
    %207 = vmatpush1.xpose.msra.mxu0 0.0
    %208 = vmatprep.subr.mxu0 0.0
    %209 = vmatpush1.xpose.msra.mxu0 0.0
    %210 = vmatprep.subr.mxu0 0.0
    %211 = vmatpush1.xpose.msra.mxu0 0.0
    %212 = vmatprep.subr.mxu0 0.0
    %213 = vmatpush1.xpose.msra.mxu0 0.0
    %214 = vmatprep.subr.mxu0 0.0
    %215 = vmatpush1.xpose.msra.mxu0 0.0
    %216 = vmatprep.subr.mxu0 0.0
    %217 = vmatpush1.xpose.msra.mxu0 0.0
    %218 = vmatprep.subr.mxu0 0.0
    %219 = vmatpush1.xpose.msra.mxu0 0.0
    %220 = vmatprep.subr.mxu0 0.0
    %221 = vmatpush1.xpose.msra.mxu0 0.0
    %222 = vmatprep.subr.mxu0 0.0
    %223 = vmatpush1.xpose.msra.mxu0 0.0
    %224 = vmatprep.subr.mxu0 0.0
    %225 = vmatpush1.xpose.msra.mxu0 0.0
    %226 = vmatprep.subr.mxu0 0.0
    %227 = vmatpush1.xpose.msra.mxu0 0.0
    %228 = vmatprep.subr.mxu0 0.0
    %229 = vmatpush1.xpose.msra.mxu0 0.0
    %230 = vmatprep.subr.mxu0 0.0
    %231 = vmatpush1.xpose.msra.mxu0 0.0
    %232 = vmatprep.subr.mxu0 0.0
    %233 = vmatpush1.xpose.msra.mxu0 0.0
    %234 = vmatprep.subr.mxu0 0.0
    %235 = vmatpush1.xpose.msra.mxu0 0.0
    %236 = vmatprep.subr.mxu0 0.0
    %237 = vmatpush1.xpose.msra.mxu0 0.0
    %238 = vmatprep.subr.mxu0 0.0
    %239 = vmatpush1.xpose.msra.mxu0 0.0
    %240 = vmatprep.subr.mxu0 0.0
    %241 = vmatpush1.xpose.msra.mxu0 0.0
    %242 = vmatprep.subr.mxu0 0.0
    %243 = vmatpush1.xpose.msra.mxu0 0.0
    %244 = vmatprep.subr.mxu0 0.0
    %245 = vmatpush1.xpose.msra.mxu0 0.0
    %246 = vmatprep.subr.mxu0 0.0
    %247 = vmatpush1.xpose.msra.mxu0 0.0
    %248 = vmatprep.subr.mxu0 0.0
    %249 = vmatpush1.xpose.msra.mxu0 0.0
    %250 = vmatprep.subr.mxu0 0.0
    %251 = vmatpush1.xpose.msra.mxu0 0.0
    %252 = vmatprep.subr.mxu0 0.0
    %253 = vmatpush1.xpose.msra.mxu0 0.0
    %254 = vmatprep.subr.mxu0 0.0
    %255 = vmatpush1.xpose.msra.mxu0 0.0
    %256 = vmatprep.subr.mxu0 0.0
    %257 = vmatpush1.xpose.msra.mxu0 0.0
    %258 = vmatprep.mubr.f32.mxu0 0.0
    %259 = vmatmul.mubr.f32.gmra.mrb[0].mxu0 %v177
    %v260 = vpop.f32.mrb[0].mxu0
    %v261 = vadd.f32 %v175, %v260
    %v262 = vpop.f32.mrb[0].mxu0
    %263 = vmatprep.mubr.f32.mxu0 0.0
    %264 = vmatmul.mubr.f32.gmra.mrb[0].mxu0 %v180
    %v265 = vpop.f32.mrb[0].mxu0
    %v266 = vadd.f32 %v175, %v265
    %v267 = vpop.f32.mrb[0].mxu0
    %268 = vdwg.mxu0
    %v269 = vmul.f32 %v164, %v164
    %vm270 = vcmask 254976
    %v271 = vsel %vm270, %v269, 0.0
    %272 = vadd.xlane.f32.xlu0 %v271
    %v273 = vpop.xlane.xlu0 %272
    %v274 = vadd.f32 %v273, 1e-12
    %v275 = vrsqrt.pop %v274
    %v276 = vmul.f32 %v261, %v261
    %v277 = vmul.f32 %v266, %v266
    %v278 = vsel %vm81, %v276, 0.0
    %279 = vadd.xlane.f32.xlu0 %v278
    %v280 = vpop.xlane.xlu0 %279
    %v281 = vsel %vm81, %v277, 0.0
    %282 = vadd.xlane.f32.xlu0 %v281
    %v283 = vpop.xlane.xlu0 %282
    %v284 = vadd.f32 %v280, 1e-12
    %v285 = vadd.f32 %v283, 1e-12
    %v286 = vrsqrt.pop %v284
    %v287 = vrsqrt.pop %v285
    %v290 = vunpack.c.l.s4 1966171168
    %v291 = vunpack.c.0.s8 %v290
    %v292 = vlaneseq
    %v293 = vshrl.u32 %v292, 7
    %v294 = vsub.s32 %v291, %v293
    %v295 = vrot.slane %v164, %v294
    %v296 = vcombine.high %v295, %v295
    %v298 = vunpack.c.l.s4 1966171168
    %v299 = vunpack.c.0.s8 %v298
    %v300 = vlaneseq
    %v301 = vshrl.u32 %v300, 7
    %v302 = vsub.s32 %v299, %v301
    %v303 = vrot.slane %v295, %v302
    %v305 = vunpack.c.l.s4 1966171168
    %v306 = vunpack.c.0.s8 %v305
    %v307 = vlaneseq
    %v308 = vshrl.u32 %v307, 7
    %v309 = vsub.s32 %v306, %v308
    %v310 = vrot.slane %v296, %v309
    %v311 = vlaneseq
    %v312 = vshrl.u32 %v311, 7
    %v313 = vsub.s32 0, %v312
    %v314 = vrot.slane %v303, %v313
    %v315 = vlaneseq
    %v316 = vshrl.u32 %v315, 7
    %v317 = vsub.s32 0, %v316
    %v318 = vrot.slane %v310, %v317
    %v321 = vmul.f32 %v314, %v261
    %v322 = vmul.f32 %v318, %v266
    %v323 = vsel %vm81, %v321, 0.0
    %324 = vadd.xlane.f32.xlu0 %v323
    %v325 = vpop.xlane.xlu0 %324
    %v326 = vsel %vm81, %v322, 0.0
    %327 = vadd.xlane.f32.xlu0 %v326
    %v328 = vpop.xlane.xlu0 %327
    %v330 = vlaneseq
    %v331 = vshrl.u32 %v330, 7
    %v332 = vsub.s32 0, %v331
    %v333 = vrot.slane %v275, %v332
    %v334 = vlaneseq
    %v335 = vshrl.u32 %v334, 7
    %v336 = vsub.s32 1, %v335
    %v337 = vrot.slane %v275, %v336
    %v340 = vmul.f32 %v325, %v333
    %v341 = vmul.f32 %v328, %v337
    %v342 = vmul.f32 %v340, %v286
    %v343 = vmul.f32 %v341, %v287
    %v344 = vadd.f32 %v342, 1.0
    %v345 = vadd.f32 %v343, 1.0
    %v346 = vmul.f32 %v344, 0.5
    %v347 = vmul.f32 %v345, 0.5
    %v348 = vmax.f32 %v346, 0.0
    %v349 = vmax.f32 %v347, 0.0
    %v350 = vmin.f32 %v348, 1.0
    %v351 = vmin.f32 %v349, 1.0
    %v352 = vadd.f32 %v350, 1e-20
    %v353 = vadd.f32 %v351, 1e-20
    %v354 = vsub.f32 1.0, %v350
    %v355 = vsub.f32 1.0, %v351
    %v356 = vadd.f32 %v354, 1e-20
    %v357 = vadd.f32 %v355, 1e-20
    %v358 = vrcp.pop %v356
    %v359 = vmul.f32 %v352, %v358
    %v360 = vrcp.pop %v357
    %v361 = vmul.f32 %v353, %v360
    %v362 = vlog2.pop %v359
    %v363 = vmul.f32 %v362, 0.6931472
    %v364 = vlog2.pop %v361
    %v365 = vmul.f32 %v364, 0.6931472
    %v366 = vld [vmem:[%s5] sm:$0x3]
    %v368 = vlaneseq
    %v369 = vshrl.u32 %v368, 7
    %v370 = vsub.s32 0, %v369
    %v371 = vrot.slane %v366, %v370
    %373 = vbcast.lane.b32.xlu0 %v371, 256
    %v374 = vpop.permute.xlu0 %373
    %v375 = vlaneseq
    %v376 = vshrl.u32 %v375, 7
    %v377 = vsub.s32 1, %v376
    %v378 = vrot.slane %v366, %v377
    %380 = vbcast.lane.b32.xlu0 %v378, 256
    %v381 = vpop.permute.xlu0 %380
    %v384 = vadd.f32 %v363, %v374
    %v385 = vadd.f32 %v365, %v381
    %s386 = sld [smem:[#allocation2]]
    %v387 = vstv %s386
    %v388 = vmul.f32 %v384, %v387
    %v389 = vmul.f32 %v385, %v387
    %v390 = vsub.f32 0.0, %v388
    %v391 = vsub.f32 0.0, %v389
    %v392 = vmul.f32 %v390, 1.442695
    %v393 = vpow.pop %v392
    %v394 = vmul.f32 %v391, 1.442695
    %v395 = vpow.pop %v394
    %v396 = vadd.f32 %v393, 1.0
    %v397 = vadd.f32 %v395, 1.0
    %v398 = vrcp.pop %v396
    %v399 = vmul.f32 1.0, %v398
    %v400 = vrcp.pop %v397
    %v401 = vmul.f32 1.0, %v400
    %404 = vset.pattern.permute.xlu0 0
    %405 = vperm.xlu0 %404, %v399
    %v406 = vpop.permute.xlu0 %405
    %407 = vset.pattern.permute.xlu0 0
    %408 = vperm.xlu0 %407, %v401
    %v409 = vpop.permute.xlu0 %408
    %v410 = vlaneseq
    %v411 = vand.u32 %v410, 127
    %v412 = vlaneseq
    %v413 = vshrl.u32 %v412, 7
    %v414 = vsub.s32 %v411, %v413
    %v415 = vrot.slane %v406, %v414
    %v416 = vlaneseq
    %v417 = vshrl.u32 %v416, 7
    %v418 = vsub.s32 %v411, %v417
    %v419 = vrot.slane %v409, %v418
    %vm420 = vcmask 1041409
    %v421 = vsel %vm420, %v419, %v415
    %vm423 = vcmask 58368
    %424 = vst.msk [vmem:[#allocation9] sm:$0x3] %vm423, %v421
    // Predicated region
    $region42: #{tpu_custom_call.1} parent=1 // pred_check
      _
    $region43: #{tpu_custom_call.1} parent=1 // pred_check_branch
      %426 = sbr.rel (0) target = $region45
    $region44: #{tpu_custom_call.1} parent=1 // pred_region
      %s428 = ssub.s32 32, 32
      %429 = vsyncadd [#allocation5], %s428
      %s431 = sshll.u32 [#allocation9], 4
      %s432 = int_to_ptr.vmem [resolvable:$true] %s431
      %434 = dma.vmem_to_hbm [thread:$0]  %s432, 32, %s7, [#allocation5]
    $region45: #{tpu_custom_call.1} parent=1 // pred_fallthru
      _
    // Predicated region
    $region46: #{tpu_custom_call.1} parent=1 // pred_check
      _
    $region47: #{tpu_custom_call.1} parent=1 // pred_check_branch
      %436 = sbr.rel (0) target = $region49
    $region48: #{tpu_custom_call.1} parent=1 // pred_region
      %437 = dma.done [#allocation5], 32
    $region49: #{tpu_custom_call.1} parent=1 // pred_fallthru
      _
    %438 = vsyncpa [#allocation4], 1
    %439 = vsyncpa [#allocation7], 1
    %440 = vsyncpa [#allocation5], 1

</llo_original>
